<compile_context>
chip_gen: v5e
topology: v5e:2x2
jax: 0.10.0
libtpu: 0.0.40
codegen_flags: <defaults>
</compile_context>

<pallas_src>
import jax
import jax.numpy as jnp
from jax.experimental import pallas as pl
from jax.experimental.pallas import tpu as pltpu


def _normalize_pair_kernel(scale_ref, bias_ref, x1_ref, x2_ref, o1_ref, o2_ref):
    # scale_ref / bias_ref: (C,) f32 in SMEM.  x*/o*: (nb, C, th, W) VMEM tiles.
    # out = x * (1/std) + (-mean/std) == (x - mean) / std, per channel.
    C = x1_ref.shape[1]
    for c in range(C):                      # C is tiny (3-4); unrolled at trace time
        s = scale_ref[c]
        b = bias_ref[c]
        o1_ref[:, c, :, :] = (x1_ref[:, c, :, :].astype(jnp.float32) * s + b).astype(o1_ref.dtype)
        o2_ref[:, c, :, :] = (x2_ref[:, c, :, :].astype(jnp.float32) * s + b).astype(o2_ref.dtype)


def _round_up(x, m):
    return -(-x // m) * m


def _vmem_capacity_bytes():
    """Per-TensorCore VMEM capacity; conservative (v7x, 64 MiB) fallback."""
    try:
        info = pltpu.get_tpu_info()
        cap = getattr(info, "vmem_capacity_bytes", None)
        if cap:
            return int(cap)
    except Exception:
        pass
    return 64 << 20


def normalize_pair(x1, x2, mean, std, *, out_dtype=None):
    """Returns ((x1 - mean[None,:,None,None]) / std[...], same for x2), NCHW."""
    assert x1.shape == x2.shape, "both augmentations must share a shape"
    N, C, H, W = x1.shape

    o1_dtype = jnp.dtype(out_dtype) if out_dtype is not None else jnp.dtype(x1.dtype)
    o2_dtype = jnp.dtype(out_dtype) if out_dtype is not None else jnp.dtype(x2.dtype)

    mean = jnp.asarray(mean, dtype=jnp.float32).reshape(C)
    std = jnp.asarray(std, dtype=jnp.float32).reshape(C)
    scale = 1.0 / std                      # x*scale + bias == (x - mean)/std
    bias = -mean / std

    # ---- generation-aware VMEM budget -------------------------------------
    vmem_cap = _vmem_capacity_bytes()                 # 64 MiB v7x, 128 MiB v5e/v6e
    small_vmem = vmem_cap <= (64 << 20)
    max_resident = (40 << 20) if small_vmem else (80 << 20)   # 8 resident blocks total
    target_block = (3 << 20) if small_vmem else (6 << 20)     # per-array block bytes

    # Real VMEM block bytes, including (sublane, lane) padding of the minor
    # (th, W) dims.  Leading (nb, C) dims do not pad.
    lanes_pad = _round_up(W, 128)
    itemsizes = [jnp.dtype(d).itemsize for d in (x1.dtype, x2.dtype, o1_dtype, o2_dtype)]
    max_itemsize = max(itemsizes)

    def one_block_bytes(nb, th, itemsize):
        return nb * C * _round_up(th, 8) * lanes_pad * itemsize

    def resident_bytes(nb, th):
        # 2 inputs + 2 outputs, each double-buffered by the Pallas pipeline.
        return 2 * sum(one_block_bytes(nb, th, s) for s in itemsizes)

    # ---- H tile: only shrinks below H if a single sample is huge ----------
    th = H
    if (resident_bytes(1, H) > max_resident
            or one_block_bytes(1, H, max_itemsize) > target_block):
        per_row_resident = max(1, resident_bytes(1, 8) // 8)
        per_row_one = max(1, one_block_bytes(1, 8, max_itemsize) // 8)
        th = min(max_resident // per_row_resident, target_block // per_row_one)
        th = min(H, max(8, (th // 8) * 8))            # multiple of 8 (sublane rule)
    grid_h = pl.cdiv(H, th)

    # ---- batch tile --------------------------------------------------------
    per_sample_one = max(1, one_block_bytes(1, th, max_itemsize))
    nb = max(1, min(N,
                    target_block // per_sample_one,
                    max_resident // max(1, resident_bytes(1, th))))
    if N >= 2:
        nb = min(nb, pl.cdiv(N, 2))                    # keep >= 2 programs (megacore)
    grid_n = pl.cdiv(N, nb)
    if grid_n > 1 and grid_n % 2 == 1:
        # Prefer an even program count so v7x's two TensorCores stay balanced.
        for cand in range(nb, max(1, nb - 3) - 1, -1):
            if pl.cdiv(N, cand) % 2 == 0:
                nb = cand
                break
        grid_n = pl.cdiv(N, nb)
    grid = (grid_n, grid_h)

    vmem_limit = int(min(vmem_cap - (4 << 20),
                         max(32 << 20, resident_bytes(nb, th) + (8 << 20))))

    img_spec = pl.BlockSpec((nb, C, th, W), lambda i, j: (i, 0, j, 0))
    param_spec = pl.BlockSpec(memory_space=pltpu.MemorySpace.SMEM)

    o1, o2 = pl.pallas_call(
        _normalize_pair_kernel,
        out_shape=(
            jax.ShapeDtypeStruct((N, C, H, W), o1_dtype),
            jax.ShapeDtypeStruct((N, C, H, W), o2_dtype),
        ),
        grid=grid,
        in_specs=[param_spec, param_spec, img_spec, img_spec],
        out_specs=(img_spec, img_spec),
        compiler_params=pltpu.CompilerParams(
            dimension_semantics=("parallel", "parallel"),
            vmem_limit_bytes=vmem_limit,
        ),
    )(scale, bias, x1, x2)

    return o1, o2


class NormalizeByChannelMeanStdSimSiam:
    """JAX/Pallas port of the PyTorch module (buffers `mean`, `std` of shape (C,))."""

    def __init__(self, mean, std):
        self.mean = jnp.asarray(mean, dtype=jnp.float32)
        self.std = jnp.asarray(std, dtype=jnp.float32)

    def __call__(self, im_aug1, im_aug2):
        return normalize_pair(im_aug1, im_aug2, self.mean, self.std)


if __name__ == "__main__":
    key = jax.random.PRNGKey(0)
    k1, k2 = jax.random.split(key)

    N, C, H, W = 2, 4, 16, 16
    im_aug1 = jax.random.uniform(k1, (N, C, H, W), dtype=jnp.float32)
    im_aug2 = jax.random.uniform(k2, (N, C, H, W), dtype=jnp.float32)

    mean = jnp.array([0.485, 0.456, 0.406, 0.5], dtype=jnp.float32)
    std = jnp.array([0.229, 0.224, 0.225, 0.25], dtype=jnp.float32)

    module = NormalizeByChannelMeanStdSimSiam(mean, std)
    out1, out2 = module(im_aug1, im_aug2)
    jax.block_until_ready((out1, out2))

    # Reference check against plain-JAX broadcast semantics.
    ref1 = (im_aug1 - mean[None, :, None, None]) / std[None, :, None, None]
    ref2 = (im_aug2 - mean[None, :, None, None]) / std[None, :, None, None]
    assert jnp.allclose(out1, ref1, atol=1e-5, rtol=1e-5)
    assert jnp.allclose(out2, ref2, atol=1e-5, rtol=1e-5)
    assert out1.shape == (N, C, H, W) and out1.dtype == im_aug1.dtype
    assert out2.shape == (N, C, H, W) and out2.dtype == im_aug2.dtype

    print("KERNEL_OK")
</pallas_src>

<mosaic_0001>
module attributes {stable_mosaic.version = 11 : i64} {
  func.func @_normalize_pair_kernel(%arg0: i32, %arg1: i32, %arg2: memref<4xf32, #tpu.memory_space<smem>>, %arg3: memref<4xf32, #tpu.memory_space<smem>>, %arg4: memref<1x4x16x16xf32, #tpu.memory_space<vmem>>, %arg5: memref<1x4x16x16xf32, #tpu.memory_space<vmem>>, %arg6: memref<1x4x16x16xf32, #tpu.memory_space<vmem>>, %arg7: memref<1x4x16x16xf32, #tpu.memory_space<vmem>>) attributes {dimension_semantics = [#tpu.dimension_semantics<parallel>, #tpu.dimension_semantics<parallel>], iteration_bounds = array<i64: 2, 1>, scalar_prefetch = 0 : i64, scratch_operands = 0 : i64, tpu.core_type = #tpu.core_type<tc>, window_params = [{transform_indices = @transform_0, window_bounds = array<i64: 4>}, {transform_indices = @transform_1, window_bounds = array<i64: 4>}, {transform_indices = @transform_2, window_bounds = array<i64: 1, 4, 16, 16>}, {transform_indices = @transform_3, window_bounds = array<i64: 1, 4, 16, 16>}, {transform_indices = @transform_4, window_bounds = array<i64: 1, 4, 16, 16>}, {transform_indices = @transform_5, window_bounds = array<i64: 1, 4, 16, 16>}]} {
    %c0 = arith.constant 0 : index
    %0 = memref.load %arg2[%c0] : memref<4xf32, #tpu.memory_space<smem>>
    %c0_0 = arith.constant 0 : index
    %1 = memref.load %arg3[%c0_0] : memref<4xf32, #tpu.memory_space<smem>>
    %c0_1 = arith.constant 0 : index
    %c0_2 = arith.constant 0 : index
    %c0_3 = arith.constant 0 : index
    %c0_4 = arith.constant 0 : index
    %2 = vector.load %arg4[%c0_1, %c0_2, %c0_3, %c0_4] : memref<1x4x16x16xf32, #tpu.memory_space<vmem>>, vector<1x1x16x16xf32>
    %3 = vector.shape_cast %2 : vector<1x1x16x16xf32> to vector<1x16x16xf32>
    %4 = vector.broadcast %0 : f32 to vector<1x16x16xf32>
    %5 = arith.mulf %3, %4 : vector<1x16x16xf32>
    %6 = vector.broadcast %1 : f32 to vector<1x16x16xf32>
    %7 = arith.addf %5, %6 : vector<1x16x16xf32>
    %c0_5 = arith.constant 0 : index
    %c0_6 = arith.constant 0 : index
    %c0_7 = arith.constant 0 : index
    %c0_8 = arith.constant 0 : index
    %8 = vector.load %arg6[%c0_5, %c0_6, %c0_7, %c0_8] : memref<1x4x16x16xf32, #tpu.memory_space<vmem>>, vector<1x1x16x16xf32>
    %9 = vector.shape_cast %8 : vector<1x1x16x16xf32> to vector<1x16x16xf32>
    %10 = vector.shape_cast %7 : vector<1x16x16xf32> to vector<1x1x16x16xf32>
    tpu.vector_store %arg6[%c0_5, %c0_6, %c0_7, %c0_8], %10 {strides = array<i32>} : memref<1x4x16x16xf32, #tpu.memory_space<vmem>>, vector<1x1x16x16xf32>,
    %c0_9 = arith.constant 0 : index
    %c0_10 = arith.constant 0 : index
    %c0_11 = arith.constant 0 : index
    %c0_12 = arith.constant 0 : index
    %11 = vector.load %arg5[%c0_9, %c0_10, %c0_11, %c0_12] : memref<1x4x16x16xf32, #tpu.memory_space<vmem>>, vector<1x1x16x16xf32>
    %12 = vector.shape_cast %11 : vector<1x1x16x16xf32> to vector<1x16x16xf32>
    %13 = vector.broadcast %0 : f32 to vector<1x16x16xf32>
    %14 = arith.mulf %12, %13 : vector<1x16x16xf32>
    %15 = vector.broadcast %1 : f32 to vector<1x16x16xf32>
    %16 = arith.addf %14, %15 : vector<1x16x16xf32>
    %c0_13 = arith.constant 0 : index
    %c0_14 = arith.constant 0 : index
    %c0_15 = arith.constant 0 : index
    %c0_16 = arith.constant 0 : index
    %17 = vector.load %arg7[%c0_13, %c0_14, %c0_15, %c0_16] : memref<1x4x16x16xf32, #tpu.memory_space<vmem>>, vector<1x1x16x16xf32>
    %18 = vector.shape_cast %17 : vector<1x1x16x16xf32> to vector<1x16x16xf32>
    %19 = vector.shape_cast %16 : vector<1x16x16xf32> to vector<1x1x16x16xf32>
    tpu.vector_store %arg7[%c0_13, %c0_14, %c0_15, %c0_16], %19 {strides = array<i32>} : memref<1x4x16x16xf32, #tpu.memory_space<vmem>>, vector<1x1x16x16xf32>,
    %c1 = arith.constant 1 : index
    %20 = memref.load %arg2[%c1] : memref<4xf32, #tpu.memory_space<smem>>
    %c1_17 = arith.constant 1 : index
    %21 = memref.load %arg3[%c1_17] : memref<4xf32, #tpu.memory_space<smem>>
    %c0_18 = arith.constant 0 : index
    %c1_19 = arith.constant 1 : index
    %c0_20 = arith.constant 0 : index
    %c0_21 = arith.constant 0 : index
    %22 = vector.load %arg4[%c0_18, %c1_19, %c0_20, %c0_21] : memref<1x4x16x16xf32, #tpu.memory_space<vmem>>, vector<1x1x16x16xf32>
    %23 = vector.shape_cast %22 : vector<1x1x16x16xf32> to vector<1x16x16xf32>
    %24 = vector.broadcast %20 : f32 to vector<1x16x16xf32>
    %25 = arith.mulf %23, %24 : vector<1x16x16xf32>
    %26 = vector.broadcast %21 : f32 to vector<1x16x16xf32>
    %27 = arith.addf %25, %26 : vector<1x16x16xf32>
    %c0_22 = arith.constant 0 : index
    %c1_23 = arith.constant 1 : index
    %c0_24 = arith.constant 0 : index
    %c0_25 = arith.constant 0 : index
    %28 = vector.load %arg6[%c0_22, %c1_23, %c0_24, %c0_25] : memref<1x4x16x16xf32, #tpu.memory_space<vmem>>, vector<1x1x16x16xf32>
    %29 = vector.shape_cast %28 : vector<1x1x16x16xf32> to vector<1x16x16xf32>
    %30 = vector.shape_cast %27 : vector<1x16x16xf32> to vector<1x1x16x16xf32>
    tpu.vector_store %arg6[%c0_22, %c1_23, %c0_24, %c0_25], %30 {strides = array<i32>} : memref<1x4x16x16xf32, #tpu.memory_space<vmem>>, vector<1x1x16x16xf32>,
    %c0_26 = arith.constant 0 : index
    %c1_27 = arith.constant 1 : index
    %c0_28 = arith.constant 0 : index
    %c0_29 = arith.constant 0 : index
    %31 = vector.load %arg5[%c0_26, %c1_27, %c0_28, %c0_29] : memref<1x4x16x16xf32, #tpu.memory_space<vmem>>, vector<1x1x16x16xf32>
    %32 = vector.shape_cast %31 : vector<1x1x16x16xf32> to vector<1x16x16xf32>
    %33 = vector.broadcast %20 : f32 to vector<1x16x16xf32>
    %34 = arith.mulf %32, %33 : vector<1x16x16xf32>
    %35 = vector.broadcast %21 : f32 to vector<1x16x16xf32>
    %36 = arith.addf %34, %35 : vector<1x16x16xf32>
    %c0_30 = arith.constant 0 : index
    %c1_31 = arith.constant 1 : index
    %c0_32 = arith.constant 0 : index
    %c0_33 = arith.constant 0 : index
    %37 = vector.load %arg7[%c0_30, %c1_31, %c0_32, %c0_33] : memref<1x4x16x16xf32, #tpu.memory_space<vmem>>, vector<1x1x16x16xf32>
    %38 = vector.shape_cast %37 : vector<1x1x16x16xf32> to vector<1x16x16xf32>
    %39 = vector.shape_cast %36 : vector<1x16x16xf32> to vector<1x1x16x16xf32>
    tpu.vector_store %arg7[%c0_30, %c1_31, %c0_32, %c0_33], %39 {strides = array<i32>} : memref<1x4x16x16xf32, #tpu.memory_space<vmem>>, vector<1x1x16x16xf32>,
    %c2 = arith.constant 2 : index
    %40 = memref.load %arg2[%c2] : memref<4xf32, #tpu.memory_space<smem>>
    %c2_34 = arith.constant 2 : index
    %41 = memref.load %arg3[%c2_34] : memref<4xf32, #tpu.memory_space<smem>>
    %c0_35 = arith.constant 0 : index
    %c2_36 = arith.constant 2 : index
    %c0_37 = arith.constant 0 : index
    %c0_38 = arith.constant 0 : index
    %42 = vector.load %arg4[%c0_35, %c2_36, %c0_37, %c0_38] : memref<1x4x16x16xf32, #tpu.memory_space<vmem>>, vector<1x1x16x16xf32>
    %43 = vector.shape_cast %42 : vector<1x1x16x16xf32> to vector<1x16x16xf32>
    %44 = vector.broadcast %40 : f32 to vector<1x16x16xf32>
    %45 = arith.mulf %43, %44 : vector<1x16x16xf32>
    %46 = vector.broadcast %41 : f32 to vector<1x16x16xf32>
    %47 = arith.addf %45, %46 : vector<1x16x16xf32>
    %c0_39 = arith.constant 0 : index
    %c2_40 = arith.constant 2 : index
    %c0_41 = arith.constant 0 : index
    %c0_42 = arith.constant 0 : index
    %48 = vector.load %arg6[%c0_39, %c2_40, %c0_41, %c0_42] : memref<1x4x16x16xf32, #tpu.memory_space<vmem>>, vector<1x1x16x16xf32>
    %49 = vector.shape_cast %48 : vector<1x1x16x16xf32> to vector<1x16x16xf32>
    %50 = vector.shape_cast %47 : vector<1x16x16xf32> to vector<1x1x16x16xf32>
    tpu.vector_store %arg6[%c0_39, %c2_40, %c0_41, %c0_42], %50 {strides = array<i32>} : memref<1x4x16x16xf32, #tpu.memory_space<vmem>>, vector<1x1x16x16xf32>,
    %c0_43 = arith.constant 0 : index
    %c2_44 = arith.constant 2 : index
    %c0_45 = arith.constant 0 : index
    %c0_46 = arith.constant 0 : index
    %51 = vector.load %arg5[%c0_43, %c2_44, %c0_45, %c0_46] : memref<1x4x16x16xf32, #tpu.memory_space<vmem>>, vector<1x1x16x16xf32>
    %52 = vector.shape_cast %51 : vector<1x1x16x16xf32> to vector<1x16x16xf32>
    %53 = vector.broadcast %40 : f32 to vector<1x16x16xf32>
    %54 = arith.mulf %52, %53 : vector<1x16x16xf32>
    %55 = vector.broadcast %41 : f32 to vector<1x16x16xf32>
    %56 = arith.addf %54, %55 : vector<1x16x16xf32>
    %c0_47 = arith.constant 0 : index
    %c2_48 = arith.constant 2 : index
    %c0_49 = arith.constant 0 : index
    %c0_50 = arith.constant 0 : index
    %57 = vector.load %arg7[%c0_47, %c2_48, %c0_49, %c0_50] : memref<1x4x16x16xf32, #tpu.memory_space<vmem>>, vector<1x1x16x16xf32>
    %58 = vector.shape_cast %57 : vector<1x1x16x16xf32> to vector<1x16x16xf32>
    %59 = vector.shape_cast %56 : vector<1x16x16xf32> to vector<1x1x16x16xf32>
    tpu.vector_store %arg7[%c0_47, %c2_48, %c0_49, %c0_50], %59 {strides = array<i32>} : memref<1x4x16x16xf32, #tpu.memory_space<vmem>>, vector<1x1x16x16xf32>,
    %c3 = arith.constant 3 : index
    %60 = memref.load %arg2[%c3] : memref<4xf32, #tpu.memory_space<smem>>
    %c3_51 = arith.constant 3 : index
    %61 = memref.load %arg3[%c3_51] : memref<4xf32, #tpu.memory_space<smem>>
    %c0_52 = arith.constant 0 : index
    %c3_53 = arith.constant 3 : index
    %c0_54 = arith.constant 0 : index
    %c0_55 = arith.constant 0 : index
    %62 = vector.load %arg4[%c0_52, %c3_53, %c0_54, %c0_55] : memref<1x4x16x16xf32, #tpu.memory_space<vmem>>, vector<1x1x16x16xf32>
    %63 = vector.shape_cast %62 : vector<1x1x16x16xf32> to vector<1x16x16xf32>
    %64 = vector.broadcast %60 : f32 to vector<1x16x16xf32>
    %65 = arith.mulf %63, %64 : vector<1x16x16xf32>
    %66 = vector.broadcast %61 : f32 to vector<1x16x16xf32>
    %67 = arith.addf %65, %66 : vector<1x16x16xf32>
    %c0_56 = arith.constant 0 : index
    %c3_57 = arith.constant 3 : index
    %c0_58 = arith.constant 0 : index
    %c0_59 = arith.constant 0 : index
    %68 = vector.load %arg6[%c0_56, %c3_57, %c0_58, %c0_59] : memref<1x4x16x16xf32, #tpu.memory_space<vmem>>, vector<1x1x16x16xf32>
    %69 = vector.shape_cast %68 : vector<1x1x16x16xf32> to vector<1x16x16xf32>
    %70 = vector.shape_cast %67 : vector<1x16x16xf32> to vector<1x1x16x16xf32>
    tpu.vector_store %arg6[%c0_56, %c3_57, %c0_58, %c0_59], %70 {strides = array<i32>} : memref<1x4x16x16xf32, #tpu.memory_space<vmem>>, vector<1x1x16x16xf32>,
    %c0_60 = arith.constant 0 : index
    %c3_61 = arith.constant 3 : index
    %c0_62 = arith.constant 0 : index
    %c0_63 = arith.constant 0 : index
    %71 = vector.load %arg5[%c0_60, %c3_61, %c0_62, %c0_63] : memref<1x4x16x16xf32, #tpu.memory_space<vmem>>, vector<1x1x16x16xf32>
    %72 = vector.shape_cast %71 : vector<1x1x16x16xf32> to vector<1x16x16xf32>
    %73 = vector.broadcast %60 : f32 to vector<1x16x16xf32>
    %74 = arith.mulf %72, %73 : vector<1x16x16xf32>
    %75 = vector.broadcast %61 : f32 to vector<1x16x16xf32>
    %76 = arith.addf %74, %75 : vector<1x16x16xf32>
    %c0_64 = arith.constant 0 : index
    %c3_65 = arith.constant 3 : index
    %c0_66 = arith.constant 0 : index
    %c0_67 = arith.constant 0 : index
    %77 = vector.load %arg7[%c0_64, %c3_65, %c0_66, %c0_67] : memref<1x4x16x16xf32, #tpu.memory_space<vmem>>, vector<1x1x16x16xf32>
    %78 = vector.shape_cast %77 : vector<1x1x16x16xf32> to vector<1x16x16xf32>
    %79 = vector.shape_cast %76 : vector<1x16x16xf32> to vector<1x1x16x16xf32>
    tpu.vector_store %arg7[%c0_64, %c3_65, %c0_66, %c0_67], %79 {strides = array<i32>} : memref<1x4x16x16xf32, #tpu.memory_space<vmem>>, vector<1x1x16x16xf32>,
    return
  }
  func.func @transform_0(%arg0: i32, %arg1: i32) -> i32 {
    %c0_i32 = arith.constant 0 : i32
    %c0_i32_0 = arith.constant 0 : i32
    return %c0_i32 : i32
  }
  func.func @transform_1(%arg0: i32, %arg1: i32) -> i32 {
    %c0_i32 = arith.constant 0 : i32
    %c0_i32_0 = arith.constant 0 : i32
    return %c0_i32 : i32
  }
  func.func @transform_2(%arg0: i32, %arg1: i32) -> (i32, i32, i32, i32) {
    %c0_i32 = arith.constant 0 : i32
    %c0_i32_0 = arith.constant 0 : i32
    %c0_i32_1 = arith.constant 0 : i32
    return %arg0, %c0_i32, %arg1, %c0_i32_0 : i32, i32, i32, i32
  }
  func.func @transform_3(%arg0: i32, %arg1: i32) -> (i32, i32, i32, i32) {
    %c0_i32 = arith.constant 0 : i32
    %c0_i32_0 = arith.constant 0 : i32
    %c0_i32_1 = arith.constant 0 : i32
    return %arg0, %c0_i32, %arg1, %c0_i32_0 : i32, i32, i32, i32
  }
  func.func @transform_4(%arg0: i32, %arg1: i32) -> (i32, i32, i32, i32) {
    %c0_i32 = arith.constant 0 : i32
    %c0_i32_0 = arith.constant 0 : i32
    %c0_i32_1 = arith.constant 0 : i32
    return %arg0, %c0_i32, %arg1, %c0_i32_0 : i32, i32, i32, i32
  }
  func.func @transform_5(%arg0: i32, %arg1: i32) -> (i32, i32, i32, i32) {
    %c0_i32 = arith.constant 0 : i32
    %c0_i32_0 = arith.constant 0 : i32
    %c0_i32_1 = arith.constant 0 : i32
    return %arg0, %c0_i32, %arg1, %c0_i32_0 : i32, i32, i32, i32
  }
}

</mosaic_0001>

<llo_original>
// kernel: tpu_custom_call.1
$region0: #{tpu_custom_call.1}
  #allocation0 [shape = 'u32[]', space=smem, size = 0x4, offset = 0x4, fixed_abs, tag = 'smem constant byte address 0x4 - core index']
  #allocation1 [shape = 'u32[72,128]{1,0:T(1,128)}', space=vmem, size = 0x9000, scoped, tag = 'internal scratch']
  %s0 = inlined_call_operand.hbm [shape: f32[4], index: 0, kind: input, shape index: {}]
  %s1 = inlined_call_operand.hbm [shape: f32[4], index: 1, kind: input, shape index: {}]
  %s2 = inlined_call_operand.hbm [shape: f32[2,4,16,16], index: 2, kind: input, shape index: {}]
  %s3 = inlined_call_operand.hbm [shape: f32[2,4,16,16], index: 3, kind: input, shape index: {}]
  %s4 = inlined_call_operand.hbm [shape: f32[2,4,16,16], index: 4, kind: output, shape index: {0}]
  %s5 = inlined_call_operand.hbm [shape: f32[2,4,16,16], index: 5, kind: output, shape index: {1}]
  %6 = xla_tuple %s4, %s5
  %s7 = sld [smem:[#allocation0]]
  $region73: #{tpu_custom_call.1} parent=0
    _
  %s9 = ssub.s32 1, %s7
  %s10 = scalar_select 0, %s9, %s7
  $region1: #{tpu_custom_call.1} parent=0
    #allocation2 [shape = 'u8[512]{0}', space=smem, size = 0x200, scoped, tag = 'input window, operand 0, single buffered']
    #allocation3 [shape = 's32[2]{0}', space=sflag, size = 0x8, scoped, tag = 'scoped memory for tpu_custom_call.1']
    #allocation4 [shape = 's32[2]{0}', space=sflag, size = 0x8, scoped, tag = 'scoped memory for tpu_custom_call.1']
    #allocation5 [shape = 's32[2]{0}', space=sflag, size = 0x8, scoped, tag = 'scoped memory for tpu_custom_call.1']
    #allocation6 [shape = 'u8[512]{0}', space=smem, size = 0x200, scoped, tag = 'input window, operand 1, single buffered']
    #allocation7 [shape = 's32[1]{0}', space=sflag, size = 0x4, scoped, tag = 'scoped memory for tpu_custom_call.1']
    #allocation8 [shape = 'u8[65536]{0}', space=vmem, size = 0x10000, scoped, tag = 'input window, operand 2']
    #allocation9 [shape = 'u8[65536]{0}', space=vmem, size = 0x10000, scoped, tag = 'input window, operand 3']
    #allocation10 [shape = 's32[2]{0}', space=sflag, size = 0x8, scoped, tag = 'scoped memory for tpu_custom_call.1']
    #allocation11 [shape = 'u8[65536]{0}', space=vmem, size = 0x10000, scoped, tag = 'output window, operand 0']
    #allocation12 [shape = 'u8[65536]{0}', space=vmem, size = 0x10000, scoped, tag = 'output window, operand 1']
    #allocation13 [shape = 's32[2]{0}', space=sflag, size = 0x8, scoped, tag = 'scoped memory for tpu_custom_call.1']
    %11 = vsyncpa [#allocation5], 0
    %12 = vsyncpa [#allocation7], 0
    %13 = vsyncpa [#allocation3], 0
    %s14 = scalar_lea.sflag [#allocation3], 1
    %15 = vsyncpa %s14, 0
    %16 = vsyncpa [#allocation10], 0
    %s17 = scalar_lea.sflag [#allocation10], 1
    %18 = vsyncpa %s17, 0
    %19 = vsyncpa [#allocation4], 0
    %s20 = scalar_lea.sflag [#allocation4], 1
    %21 = vsyncpa %s20, 0
    %22 = vsyncpa [#allocation13], 0
    %s23 = scalar_lea.sflag [#allocation13], 1
    %24 = vsyncpa %s23, 0
    loop: start=0, step=1, limit=4
    $region2: #{tpu_custom_call.1} parent=1 // loop_pre_header
      _
    $region3: #{tpu_custom_call.1} parent=1 // loop_header
      %s26 = sphi 0, %s30
      %p27 = scmp.ge.s32.totalorder %s26, 4
      %s33 = sphi 0, %s45
      %s34 = sphi 0, %s41
      %s35 = sphi 0, %s33
      %s36 = sphi 0, %s34
      %s37 = sphi 0, %s35
      %s38 = sphi 0, %s36
      %s46 = sphi 0, %s46
      %s48 = sphi 0, %s46
      %s49 = sphi 0, %s48
      %s63 = sphi 0, %s49
      %s67 = sphi 0, %s67
      %s69 = sphi 0, %s67
      %s70 = sphi 0, %s69
      %s84 = sphi 0, %s70
      %s92 = sphi 0, %s94
      %s95 = sphi 0, %s92
      %s96 = sphi 0, %s95
      %s112 = sphi 0, %s96
      %s120 = sphi 0, %s122
      %s123 = sphi 0, %s120
      %s124 = sphi 0, %s123
      %s140 = sphi 0, %s124
      %s148 = sphi 0, %s150
      %s151 = sphi 0, %s148
      %s152 = sphi 0, %s151
      %s168 = sphi 0, %s152
      %s176 = sphi 0, %s178
      %s179 = sphi 0, %s176
      %s180 = sphi 0, %s179
      %s196 = sphi 0, %s180
    $region4: #{tpu_custom_call.1} parent=1 // loop_header_branch
      %29 = sbr.rel (%p27) target = $region8
    $region5: #{tpu_custom_call.1} parent=1 // loop_body
      %s31 = ssub.s32 %s26, 1
      %s32 = ssub.s32 %s26, 2
      %s39 = sadd.s32 1, %s34
      %p40 = scmp.ge.s32.totalorder %s39, 1
      %s41 = scalar_select %p40, 0, %s39
      %s42 = sadd.s32 1, %s33
      %s43 = scalar_select %p40, %s42, %s33
      %p44 = scmp.ge.s32.totalorder %s43, 2
      %s45 = scalar_select %p44, 0, %s43
      %s47 = sadd.s32 %s46, 1
      %p50 = scmp.eq.s32.totalorder %s26, 1
      %p51 = scmp.ne.s32.totalorder %s46, %s48
      %p52 = scmp.eq.s32.totalorder %s26, 0
      %p53 = por %p51, %p52
      %p54 = scmp.ne.s32.totalorder %s46, %s48
      %p55 = scmp.eq.s32.totalorder %s31, 1
      %p56 = por %p54, %p55
      %p57 = scmp.ne.s32.totalorder %s48, %s49
      %p58 = scmp.eq.s32.totalorder %s31, 0
      %p59 = por %p57, %p58
      %p60 = scmp.ne.s32.totalorder %s48, %s49
      %p61 = scmp.eq.s32.totalorder %s32, 1
      %p62 = por %p60, %p61
      %p64 = scmp.ne.s32.totalorder %s49, %s63
      %p65 = scmp.eq.s32.totalorder %s32, 0
      %p66 = por %p64, %p65
      %s68 = sadd.s32 %s67, 1
      %p71 = scmp.eq.s32.totalorder %s26, 1
      %p72 = scmp.ne.s32.totalorder %s67, %s69
      %p73 = scmp.eq.s32.totalorder %s26, 0
      %p74 = por %p72, %p73
      %p75 = scmp.ne.s32.totalorder %s67, %s69
      %p76 = scmp.eq.s32.totalorder %s31, 1
      %p77 = por %p75, %p76
      %p78 = scmp.ne.s32.totalorder %s69, %s70
      %p79 = scmp.eq.s32.totalorder %s31, 0
      %p80 = por %p78, %p79
      %p81 = scmp.ne.s32.totalorder %s69, %s70
      %p82 = scmp.eq.s32.totalorder %s32, 1
      %p83 = por %p81, %p82
      %p85 = scmp.ne.s32.totalorder %s70, %s84
      %p86 = scmp.eq.s32.totalorder %s32, 0
      %p87 = por %p85, %p86
      %s88 = ssub.s32 %s33, %s45
      %s89 = ssub.s32 %s34, %s41
      %s90 = sor.u32 %s88, %s89
      %p91 = scmp.eq.s32.totalorder %s90, 0
      %s93 = sadd.s32 %s92, 1
      %s94 = scalar_select %p91, %s92, %s93
      %p97 = pneg %p91
      %p98 = scmp.eq.s32.totalorder %s26, 1
      %p99 = por %p97, %p98
      %p100 = scmp.ne.s32.totalorder %s92, %s95
      %p101 = scmp.eq.s32.totalorder %s26, 0
      %p102 = por %p100, %p101
      %p103 = scmp.ne.s32.totalorder %s92, %s95
      %p104 = scmp.eq.s32.totalorder %s31, 1
      %p105 = por %p103, %p104
      %p106 = scmp.ne.s32.totalorder %s95, %s96
      %p107 = scmp.eq.s32.totalorder %s31, 0
      %p108 = por %p106, %p107
      %p109 = scmp.ne.s32.totalorder %s95, %s96
      %p110 = scmp.eq.s32.totalorder %s32, 1
      %p111 = por %p109, %p110
      %p113 = scmp.ne.s32.totalorder %s96, %s112
      %p114 = scmp.eq.s32.totalorder %s32, 0
      %p115 = por %p113, %p114
      %s116 = ssub.s32 %s33, %s45
      %s117 = ssub.s32 %s34, %s41
      %s118 = sor.u32 %s116, %s117
      %p119 = scmp.eq.s32.totalorder %s118, 0
      %s121 = sadd.s32 %s120, 1
      %s122 = scalar_select %p119, %s120, %s121
      %p125 = pneg %p119
      %p126 = scmp.eq.s32.totalorder %s26, 1
      %p127 = por %p125, %p126
      %p128 = scmp.ne.s32.totalorder %s120, %s123
      %p129 = scmp.eq.s32.totalorder %s26, 0
      %p130 = por %p128, %p129
      %p131 = scmp.ne.s32.totalorder %s120, %s123
      %p132 = scmp.eq.s32.totalorder %s31, 1
      %p133 = por %p131, %p132
      %p134 = scmp.ne.s32.totalorder %s123, %s124
      %p135 = scmp.eq.s32.totalorder %s31, 0
      %p136 = por %p134, %p135
      %p137 = scmp.ne.s32.totalorder %s123, %s124
      %p138 = scmp.eq.s32.totalorder %s32, 1
      %p139 = por %p137, %p138
      %p141 = scmp.ne.s32.totalorder %s124, %s140
      %p142 = scmp.eq.s32.totalorder %s32, 0
      %p143 = por %p141, %p142
      %s144 = ssub.s32 %s33, %s45
      %s145 = ssub.s32 %s34, %s41
      %s146 = sor.u32 %s144, %s145
      %p147 = scmp.eq.s32.totalorder %s146, 0
      %s149 = sadd.s32 %s148, 1
      %s150 = scalar_select %p147, %s148, %s149
      %p153 = pneg %p147
      %p154 = scmp.eq.s32.totalorder %s26, 1
      %p155 = por %p153, %p154
      %p156 = scmp.ne.s32.totalorder %s148, %s151
      %p157 = scmp.eq.s32.totalorder %s26, 0
      %p158 = por %p156, %p157
      %p159 = scmp.ne.s32.totalorder %s148, %s151
      %p160 = scmp.eq.s32.totalorder %s31, 1
      %p161 = por %p159, %p160
      %p162 = scmp.ne.s32.totalorder %s151, %s152
      %p163 = scmp.eq.s32.totalorder %s31, 0
      %p164 = por %p162, %p163
      %p165 = scmp.ne.s32.totalorder %s151, %s152
      %p166 = scmp.eq.s32.totalorder %s32, 1
      %p167 = por %p165, %p166
      %p169 = scmp.ne.s32.totalorder %s152, %s168
      %p170 = scmp.eq.s32.totalorder %s32, 0
      %p171 = por %p169, %p170
      %s172 = ssub.s32 %s33, %s45
      %s173 = ssub.s32 %s34, %s41
      %s174 = sor.u32 %s172, %s173
      %p175 = scmp.eq.s32.totalorder %s174, 0
      %s177 = sadd.s32 %s176, 1
      %s178 = scalar_select %p175, %s176, %s177
      %p181 = pneg %p175
      %p182 = scmp.eq.s32.totalorder %s26, 1
      %p183 = por %p181, %p182
      %p184 = scmp.ne.s32.totalorder %s176, %s179
      %p185 = scmp.eq.s32.totalorder %s26, 0
      %p186 = por %p184, %p185
      %p187 = scmp.ne.s32.totalorder %s176, %s179
      %p188 = scmp.eq.s32.totalorder %s31, 1
      %p189 = por %p187, %p188
      %p190 = scmp.ne.s32.totalorder %s179, %s180
      %p191 = scmp.eq.s32.totalorder %s31, 0
      %p192 = por %p190, %p191
      %p193 = scmp.ne.s32.totalorder %s179, %s180
      %p194 = scmp.eq.s32.totalorder %s32, 1
      %p195 = por %p193, %p194
      %p197 = scmp.ne.s32.totalorder %s180, %s196
      %p198 = scmp.eq.s32.totalorder %s32, 0
      %p199 = por %p197, %p198
      %p200 = scmp.le.s32.totalorder 1, %s26
      %p201 = scmp.lt.s32.totalorder %s26, 3
      %p202 = pnand %p200, %p201
      %p203 = pneg %p202
      // Predicated region
      $region9: #{tpu_custom_call.1} parent=5 // pred_check
        _
      $region10: #{tpu_custom_call.1} parent=5 // pred_check_branch
        %205 = sbr.rel (%p202) target = $region12
      $region11: #{tpu_custom_call.1} parent=5 // pred_region
        %s206 = ssub.s32 %s26, 1
        // Predicated region
        $region13: #{tpu_custom_call.1} parent=11 // pred_check
          %p207 = pneg %p59
        $region14: #{tpu_custom_call.1} parent=11 // pred_check_branch
          %209 = sbr.rel (%p207) target = $region16
        $region15: #{tpu_custom_call.1} parent=11 // pred_region
          %211 = vsyncadd [#allocation5], 0
          %s213 = sshll.u32 %s0, 4
          %s214 = int_to_ptr.hbm [resolvable:$true] %s213
          %216 = dma.hbm_to_smem %s214, 16, [#allocation2], [#allocation5]
        $region16: #{tpu_custom_call.1} parent=11 // pred_fallthru
          _
        // Predicated region
        $region17: #{tpu_custom_call.1} parent=11 // pred_check
          %p217 = pneg %p80
        $region18: #{tpu_custom_call.1} parent=11 // pred_check_branch
          %219 = sbr.rel (%p217) target = $region20
        $region19: #{tpu_custom_call.1} parent=11 // pred_region
          %221 = vsyncadd [#allocation7], 0
          %s223 = sshll.u32 %s1, 4
          %s224 = int_to_ptr.hbm [resolvable:$true] %s223
          %226 = dma.hbm_to_smem %s224, 16, [#allocation6], [#allocation7]
        $region20: #{tpu_custom_call.1} parent=11 // pred_fallthru
          _
      $region12: #{tpu_custom_call.1} parent=5 // pred_fallthru
        _
      %p227 = scmp.lt.s32.totalorder %s26, 2
      // Predicated region
      $region21: #{tpu_custom_call.1} parent=5 // pred_check
        %p228 = pneg %p227
      $region22: #{tpu_custom_call.1} parent=5 // pred_check_branch
        %230 = sbr.rel (%p228) target = $region24
      $region23: #{tpu_custom_call.1} parent=5 // pred_region
        // Predicated region
        $region25: #{tpu_custom_call.1} parent=23 // pred_check
          %p231 = pneg %p102
        $region26: #{tpu_custom_call.1} parent=23 // pred_check_branch
          %233 = sbr.rel (%p231) target = $region28
        $region27: #{tpu_custom_call.1} parent=23 // pred_region
          %s234 = sand.u32 %s92, 1
          %s235 = scalar_lea.sflag [#allocation3], %s234
          %s236 = sand.u32 %s92, 1
          %s237 = smul.addr %s236, 64
          %s238 = scalar_lea.vmem [#allocation8], %s237
          %s239 = smul.u32 2, %s34
          %241 = vsyncadd %s235, 0
          %s242 = smul.addr %s33, 8
          %s243 = sadd.s32 %s239, %s242
          %s244 = smul.addr %s243, 8
          %s245 = scalar_lea.hbm %s2, %s244
          %s246 = sshll.u32 %s245, 4
          %s247 = int_to_ptr.hbm [resolvable:$true] %s246
          %s248 = sshll.u32 %s238, 4
          %s249 = int_to_ptr.vmem [resolvable:$true] %s248
          %254 = dma.hbm_to_vmem [thread:$0]  %s247, 1024, %s249, %s235, 128, 128, 8
        $region28: #{tpu_custom_call.1} parent=23 // pred_fallthru
          _
        // Predicated region
        $region29: #{tpu_custom_call.1} parent=23 // pred_check
          %p255 = pneg %p130
        $region30: #{tpu_custom_call.1} parent=23 // pred_check_branch
          %257 = sbr.rel (%p255) target = $region32
        $region31: #{tpu_custom_call.1} parent=23 // pred_region
          %s258 = sand.u32 %s120, 1
          %s259 = scalar_lea.sflag [#allocation10], %s258
          %s260 = sand.u32 %s120, 1
          %s261 = smul.addr %s260, 64
          %s262 = scalar_lea.vmem [#allocation9], %s261
          %s263 = smul.u32 2, %s34
          %265 = vsyncadd %s259, 0
          %s266 = smul.addr %s33, 8
          %s267 = sadd.s32 %s263, %s266
          %s268 = smul.addr %s267, 8
          %s269 = scalar_lea.hbm %s3, %s268
          %s270 = sshll.u32 %s269, 4
          %s271 = int_to_ptr.hbm [resolvable:$true] %s270
          %s272 = sshll.u32 %s262, 4
          %s273 = int_to_ptr.vmem [resolvable:$true] %s272
          %278 = dma.hbm_to_vmem [thread:$0]  %s271, 1024, %s273, %s259, 128, 128, 8
        $region32: #{tpu_custom_call.1} parent=23 // pred_fallthru
          _
      $region24: #{tpu_custom_call.1} parent=5 // pred_fallthru
        _
      %p279 = scmp.le.s32.totalorder 1, %s26
      %p280 = scmp.lt.s32.totalorder %s26, 3
      %p281 = pnand %p279, %p280
      %p282 = pneg %p281
      // Predicated region
      $region33: #{tpu_custom_call.1} parent=5 // pred_check
        _
      $region34: #{tpu_custom_call.1} parent=5 // pred_check_branch
        %284 = sbr.rel (%p281) target = $region36
      $region35: #{tpu_custom_call.1} parent=5 // pred_region
        %s285 = ssub.s32 %s26, 1
        // Predicated region
        $region37: #{tpu_custom_call.1} parent=35 // pred_check
          %p286 = pneg %p59
        $region38: #{tpu_custom_call.1} parent=35 // pred_check_branch
          %288 = sbr.rel (%p286) target = $region40
        $region39: #{tpu_custom_call.1} parent=35 // pred_region
          %290 = dma.done [#allocation5], 16
        $region40: #{tpu_custom_call.1} parent=35 // pred_fallthru
          _
        // Predicated region
        $region41: #{tpu_custom_call.1} parent=35 // pred_check
          %p291 = pneg %p80
        $region42: #{tpu_custom_call.1} parent=35 // pred_check_branch
          %293 = sbr.rel (%p291) target = $region44
        $region43: #{tpu_custom_call.1} parent=35 // pred_region
          %295 = dma.done [#allocation7], 16
        $region44: #{tpu_custom_call.1} parent=35 // pred_fallthru
          _
        %s296 = sand.u32 %s95, 1
        %s297 = scalar_lea.sflag [#allocation3], %s296
        %s298 = sand.u32 %s95, 1
        %s299 = smul.addr %s298, 64
        %s300 = scalar_lea.vmem [#allocation8], %s299
        // Predicated region
        $region45: #{tpu_custom_call.1} parent=35 // pred_check
          %p301 = pneg %p108
        $region46: #{tpu_custom_call.1} parent=35 // pred_check_branch
          %303 = sbr.rel (%p301) target = $region48
        $region47: #{tpu_custom_call.1} parent=35 // pred_region
          %305 = dma.done %s297, 1024
        $region48: #{tpu_custom_call.1} parent=35 // pred_fallthru
          _
        %s306 = sand.u32 %s123, 1
        %s307 = scalar_lea.sflag [#allocation10], %s306
        %s308 = sand.u32 %s123, 1
        %s309 = smul.addr %s308, 64
        %s310 = scalar_lea.vmem [#allocation9], %s309
        // Predicated region
        $region49: #{tpu_custom_call.1} parent=35 // pred_check
          %p311 = pneg %p136
        $region50: #{tpu_custom_call.1} parent=35 // pred_check_branch
          %313 = sbr.rel (%p311) target = $region52
        $region51: #{tpu_custom_call.1} parent=35 // pred_region
          %315 = dma.done %s307, 1024
        $region52: #{tpu_custom_call.1} parent=35 // pred_fallthru
          _
        %316 = sfence
        %p317 = pneg %p59
        %p318 = pneg %p56
        %p319 = pneg %p80
        %p320 = pneg %p77
        %s321 = sand.u32 %s95, 1
        %s322 = scalar_lea.sflag [#allocation3], %s321
        %s323 = sand.u32 %s95, 1
        %s324 = smul.addr %s323, 64
        %s325 = scalar_lea.vmem [#allocation8], %s324
        %p326 = pneg %p108
        %p327 = pneg %p105
        %s328 = sand.u32 %s123, 1
        %s329 = scalar_lea.sflag [#allocation10], %s328
        %s330 = sand.u32 %s123, 1
        %s331 = smul.addr %s330, 64
        %s332 = scalar_lea.vmem [#allocation9], %s331
        %p333 = pneg %p136
        %p334 = pneg %p133
        %p335 = pneg %p164
        %p336 = pneg %p161
        %s337 = sand.u32 %s151, 1
        %s338 = scalar_lea.sflag [#allocation4], %s337
        %s339 = sand.u32 %s151, 1
        %s340 = smul.addr %s339, 64
        %s341 = scalar_lea.vmem [#allocation11], %s340
        %p342 = pneg %p192
        %p343 = pneg %p189
        %s344 = sand.u32 %s179, 1
        %s345 = scalar_lea.sflag [#allocation13], %s344
        %s346 = sand.u32 %s179, 1
        %s347 = smul.addr %s346, 64
        %s348 = scalar_lea.vmem [#allocation12], %s347
        %s349 = smul.u32 2, %s36
        %s350 = smul.u32 2, %s36
        %s351 = smul.u32 2, %s36
        %s352 = smul.u32 2, %s36
        %s353 = sld [smem:[#allocation2]]
        %s354 = sld [smem:[#allocation6]]
        %v355 = vld [vmem:[%s300] sm:$0xff]
        %v356 = vld [vmem:[%s300 + $0x8] sm:$0xff]
        %v357 = vstv %s353
        %v358 = vmul.f32 %v355, %v357
        %v359 = vmul.f32 %v356, %v357
        %v360 = vstv %s354
        %v361 = vadd.f32 %v358, %v360
        %v362 = vadd.f32 %v359, %v360
        %vm363 = vcmask 130048
        %364 = vst.msk [vmem:[%s341] sm:$0xff] %vm363, %v361
        %365 = vst.msk [vmem:[%s341 + $0x8] sm:$0xff] %vm363, %v362
        %v366 = vld [vmem:[%s310] sm:$0xff]
        %v367 = vld [vmem:[%s310 + $0x8] sm:$0xff]
        %v368 = vmul.f32 %v366, %v357
        %v369 = vmul.f32 %v367, %v357
        %v370 = vadd.f32 %v368, %v360
        %v371 = vadd.f32 %v369, %v360
        %372 = vst.msk [vmem:[%s348] sm:$0xff] %vm363, %v370
        %373 = vst.msk [vmem:[%s348 + $0x8] sm:$0xff] %vm363, %v371
        %s374 = sld [smem:[#allocation2 + $0x1]]
        %s375 = sld [smem:[#allocation6 + $0x1]]
        %s376 = scalar_lea.vmem %s300, 16 [#allocation8]
        %v377 = vld [vmem:[%s376] sm:$0xff]
        %v378 = vld [vmem:[%s376 + $0x8] sm:$0xff]
        %v379 = vstv %s374
        %v380 = vmul.f32 %v377, %v379
        %v381 = vmul.f32 %v378, %v379
        %v382 = vstv %s375
        %v383 = vadd.f32 %v380, %v382
        %v384 = vadd.f32 %v381, %v382
        %s385 = scalar_lea.vmem %s341, 16 [#allocation11]
        %386 = vst.msk [vmem:[%s385] sm:$0xff] %vm363, %v383
        %387 = vst.msk [vmem:[%s385 + $0x8] sm:$0xff] %vm363, %v384
        %s388 = scalar_lea.vmem %s310, 16 [#allocation9]
        %v389 = vld [vmem:[%s388] sm:$0xff]
        %v390 = vld [vmem:[%s388 + $0x8] sm:$0xff]
        %v391 = vmul.f32 %v389, %v379
        %v392 = vmul.f32 %v390, %v379
        %v393 = vadd.f32 %v391, %v382
        %v394 = vadd.f32 %v392, %v382
        %s395 = scalar_lea.vmem %s348, 16 [#allocation12]
        %396 = vst.msk [vmem:[%s395] sm:$0xff] %vm363, %v393
        %397 = vst.msk [vmem:[%s395 + $0x8] sm:$0xff] %vm363, %v394
        %s398 = sld [smem:[#allocation2 + $0x2]]
        %s399 = sld [smem:[#allocation6 + $0x2]]
        %s400 = scalar_lea.vmem %s300, 32 [#allocation8]
        %v401 = vld [vmem:[%s400] sm:$0xff]
        %v402 = vld [vmem:[%s400 + $0x8] sm:$0xff]
        %v403 = vstv %s398
        %v404 = vmul.f32 %v401, %v403
        %v405 = vmul.f32 %v402, %v403
        %v406 = vstv %s399
        %v407 = vadd.f32 %v404, %v406
        %v408 = vadd.f32 %v405, %v406
        %s409 = scalar_lea.vmem %s341, 32 [#allocation11]
        %410 = vst.msk [vmem:[%s409] sm:$0xff] %vm363, %v407
        %411 = vst.msk [vmem:[%s409 + $0x8] sm:$0xff] %vm363, %v408
        %s412 = scalar_lea.vmem %s310, 32 [#allocation9]
        %v413 = vld [vmem:[%s412] sm:$0xff]
        %v414 = vld [vmem:[%s412 + $0x8] sm:$0xff]
        %v415 = vmul.f32 %v413, %v403
        %v416 = vmul.f32 %v414, %v403
        %v417 = vadd.f32 %v415, %v406
        %v418 = vadd.f32 %v416, %v406
        %s419 = scalar_lea.vmem %s348, 32 [#allocation12]
        %420 = vst.msk [vmem:[%s419] sm:$0xff] %vm363, %v417
        %421 = vst.msk [vmem:[%s419 + $0x8] sm:$0xff] %vm363, %v418
        %s422 = sld [smem:[#allocation2 + $0x3]]
        %s423 = sld [smem:[#allocation6 + $0x3]]
        %s424 = scalar_lea.vmem %s300, 48 [#allocation8]
        %v425 = vld [vmem:[%s424] sm:$0xff]
        %v426 = vld [vmem:[%s424 + $0x8] sm:$0xff]
        %v427 = vstv %s422
        %v428 = vmul.f32 %v425, %v427
        %v429 = vmul.f32 %v426, %v427
        %v430 = vstv %s423
        %v431 = vadd.f32 %v428, %v430
        %v432 = vadd.f32 %v429, %v430
        %s433 = scalar_lea.vmem %s341, 48 [#allocation11]
        %434 = vst.msk [vmem:[%s433] sm:$0xff] %vm363, %v431
        %435 = vst.msk [vmem:[%s433 + $0x8] sm:$0xff] %vm363, %v432
        %s436 = scalar_lea.vmem %s310, 48 [#allocation9]
        %v437 = vld [vmem:[%s436] sm:$0xff]
        %v438 = vld [vmem:[%s436 + $0x8] sm:$0xff]
        %v439 = vmul.f32 %v437, %v427
        %v440 = vmul.f32 %v438, %v427
        %v441 = vadd.f32 %v439, %v430
        %v442 = vadd.f32 %v440, %v430
        %s443 = scalar_lea.vmem %s348, 48 [#allocation12]
        %444 = vst.msk [vmem:[%s443] sm:$0xff] %vm363, %v441
        %445 = vst.msk [vmem:[%s443 + $0x8] sm:$0xff] %vm363, %v442
        %s446 = sand.u32 %s151, 1
        %s447 = scalar_lea.sflag [#allocation4], %s446
        %s448 = sand.u32 %s151, 1
        %s449 = smul.addr %s448, 64
        %s450 = scalar_lea.vmem [#allocation11], %s449
        %s451 = sand.u32 %s179, 1
        %s452 = scalar_lea.sflag [#allocation13], %s451
        %s453 = sand.u32 %s179, 1
        %s454 = smul.addr %s453, 64
        %s455 = scalar_lea.vmem [#allocation12], %s454
        // Predicated region
        $region53: #{tpu_custom_call.1} parent=35 // pred_check
          %p456 = pneg %p161
        $region54: #{tpu_custom_call.1} parent=35 // pred_check_branch
          %458 = sbr.rel (%p456) target = $region56
        $region55: #{tpu_custom_call.1} parent=35 // pred_region
          %s459 = smul.u32 2, %s36
          %461 = vsyncadd %s447, 0
          %s462 = smul.addr %s35, 8
          %s463 = sadd.s32 %s459, %s462
          %s464 = smul.addr %s463, 8
          %s465 = scalar_lea.hbm %s4, %s464
          %s466 = sshll.u32 %s450, 4
          %s467 = int_to_ptr.vmem [resolvable:$true] %s466
          %s468 = sshll.u32 %s465, 4
          %s469 = int_to_ptr.hbm [resolvable:$true] %s468
          %474 = dma.vmem_to_hbm [thread:$0]  %s467, 1024, %s469, %s447, 128, 128, 8
        $region56: #{tpu_custom_call.1} parent=35 // pred_fallthru
          _
        // Predicated region
        $region57: #{tpu_custom_call.1} parent=35 // pred_check
          %p475 = pneg %p189
        $region58: #{tpu_custom_call.1} parent=35 // pred_check_branch
          %477 = sbr.rel (%p475) target = $region60
        $region59: #{tpu_custom_call.1} parent=35 // pred_region
          %s478 = smul.u32 2, %s36
          %480 = vsyncadd %s452, 0
          %s481 = smul.addr %s35, 8
          %s482 = sadd.s32 %s478, %s481
          %s483 = smul.addr %s482, 8
          %s484 = scalar_lea.hbm %s5, %s483
          %s485 = sshll.u32 %s455, 4
          %s486 = int_to_ptr.vmem [resolvable:$true] %s485
          %s487 = sshll.u32 %s484, 4
          %s488 = int_to_ptr.hbm [resolvable:$true] %s487
          %493 = dma.vmem_to_hbm [thread:$0]  %s486, 1024, %s488, %s452, 128, 128, 8
        $region60: #{tpu_custom_call.1} parent=35 // pred_fallthru
          _
      $region36: #{tpu_custom_call.1} parent=5 // pred_fallthru
        _
      %p494 = scmp.le.s32.totalorder 2, %s26
      // Predicated region
      $region61: #{tpu_custom_call.1} parent=5 // pred_check
        %p495 = pneg %p494
      $region62: #{tpu_custom_call.1} parent=5 // pred_check_branch
        %497 = sbr.rel (%p495) target = $region64
      $region63: #{tpu_custom_call.1} parent=5 // pred_region
        %s498 = ssub.s32 %s26, 2
        // Predicated region
        $region65: #{tpu_custom_call.1} parent=63 // pred_check
          %p499 = pneg %p167
        $region66: #{tpu_custom_call.1} parent=63 // pred_check_branch
          %501 = sbr.rel (%p499) target = $region68
        $region67: #{tpu_custom_call.1} parent=63 // pred_region
          %s502 = sand.u32 %s152, 1
          %s503 = scalar_lea.sflag [#allocation4], %s502
          %s504 = sand.u32 %s152, 1
          %s505 = smul.addr %s504, 64
          %s506 = scalar_lea.vmem [#allocation11], %s505
          %508 = dma.done %s503, 1024
        $region68: #{tpu_custom_call.1} parent=63 // pred_fallthru
          _
        // Predicated region
        $region69: #{tpu_custom_call.1} parent=63 // pred_check
          %p509 = pneg %p195
        $region70: #{tpu_custom_call.1} parent=63 // pred_check_branch
          %511 = sbr.rel (%p509) target = $region72
        $region71: #{tpu_custom_call.1} parent=63 // pred_region
          %s512 = sand.u32 %s180, 1
          %s513 = scalar_lea.sflag [#allocation13], %s512
          %s514 = sand.u32 %s180, 1
          %s515 = smul.addr %s514, 64
          %s516 = scalar_lea.vmem [#allocation12], %s515
          %518 = dma.done %s513, 1024
        $region72: #{tpu_custom_call.1} parent=63 // pred_fallthru
          _
      $region64: #{tpu_custom_call.1} parent=5 // pred_fallthru
        _
    $region6: #{tpu_custom_call.1} parent=1 // loop_footer
      %s30 = sadd.s32 1, %s26
    $region7: #{tpu_custom_call.1} parent=1 // loop_footer_branch
      %25 = sbr.rel target = $region3
    $region8: #{tpu_custom_call.1} parent=1 // loop_exit
      _
    %519 = vsyncpa [#allocation3], 1
    %s520 = scalar_lea.sflag [#allocation3], 1
    %521 = vsyncpa %s520, 1
    %522 = vsyncpa [#allocation10], 1
    %s523 = scalar_lea.sflag [#allocation10], 1
    %524 = vsyncpa %s523, 1
    %525 = vsyncpa [#allocation4], 1
    %s526 = scalar_lea.sflag [#allocation4], 1
    %527 = vsyncpa %s526, 1
    %528 = vsyncpa [#allocation13], 1
    %s529 = scalar_lea.sflag [#allocation13], 1
    %530 = vsyncpa %s529, 1
    %531 = vsyncpa [#allocation5], 1
    %s532 = scalar_lea.sflag [#allocation5], 1
    %533 = vsyncpa %s532, 1
    %534 = vsyncpa [#allocation7], 1

</llo_original>
